<compile_context>
chip_gen: v6e
topology: v6e:2x2x1
jax: 0.10.0
libtpu: 0.0.40
codegen_flags: <defaults>
</compile_context>

<pallas_src>
import jax
import jax.numpy as jnp
from jax import lax
from jax.experimental import pallas as pl
from jax.experimental.pallas import tpu as pltpu

EPS = 1e-6
LANE = 128


def _round_up(x, m):
    return ((x + m - 1) // m) * m


def _pad2d(x, shape):
    x = jnp.asarray(x, jnp.float32)
    if tuple(x.shape) == tuple(shape):
        return x
    return jnp.zeros(shape, jnp.float32).at[: x.shape[0], : x.shape[1]].set(x)


# ----------------------------------------------------------------------------
# Fused forward kernel: input Bernoulli + encode chain + decode chain in one
# pallas_call.  All layer dims are static (closed over), so the layer loop is
# unrolled at trace time and every matmul hits the MXU with 128-aligned lanes.
# ----------------------------------------------------------------------------
def _make_fused_kernel(B, nx, nzs, nxp, nzps):
    L = len(nzs)
    dims_in_valid = [nx] + list(nzs[:-1])
    dims_in_pad = [nxp] + list(nzps[:-1])

    def kernel(*refs):
        idx = 0
        xdist_ref = refs[idx]; idx += 1
        u_ref = refs[idx]; idx += 1                       # (ndraws, B, dmax)
        wt_refs = refs[idx: idx + L]; idx += L            # encode: (Din_p, Dout_p)
        w_refs = refs[idx: idx + L]; idx += L             # decode: (Dout_p, Din_p)
        bq_refs = refs[idx: idx + L]; idx += L            # (1, Dout_p)
        bp_refs = refs[idx: idx + L]; idx += L            # (1, Din_p)
        xin_ref, qdist0_ref, qsample0_ref, pdistx_ref, psamplex_ref = refs[idx: idx + 5]

        def bernoulli(p, draw_idx, valid, dpad):
            u = u_ref[draw_idx][:, :dpad]                 # static leading-dim index + static slice
            s = (u < p).astype(jnp.float32)
            if valid < dpad:
                # zero padded lanes so they never feed downstream matmuls / outputs
                lane = lax.broadcasted_iota(jnp.int32, (B, dpad), 1)
                s = jnp.where(lane < valid, s, 0.0)
            return s

        def layer(z, w_ref, b_ref):
            logits = jnp.dot(z, w_ref[...],
                             preferred_element_type=jnp.float32) + b_ref[...]
            p = 1.0 / (1.0 + jnp.exp(-logits))            # sigmoid (exp -> EUP)
            return p * (1.0 - 2.0 * EPS) + EPS            # smooth_distribution (one fma)

        draw = 0
        # xin = Bernoulli(xin_dist).sample()
        xin = bernoulli(xdist_ref[...], draw, nx, nxp); draw += 1
        xin_ref[...] = xin

        # ---- infer (encode): x -> z0 -> ... -> z(L-1) ----
        z = xin
        for l in range(L):
            p = layer(z, wt_refs[l], bq_refs[l])          # F.linear(z, W[l], bq[l])
            s = bernoulli(p, draw, nzs[l], nzps[l]); draw += 1
            if l == 0:
                qdist0_ref[...] = p
                qsample0_ref[...] = s
            z = s

        # ---- generate (decode): z(L-1) -> ... -> z0 -> x ----
        h = z
        for l in range(L - 1, 0, -1):
            p = layer(h, w_refs[l], bp_refs[l])           # F.linear(h, W[l].t(), bp[l])
            h = bernoulli(p, draw, dims_in_valid[l], dims_in_pad[l]); draw += 1
        p = layer(h, w_refs[0], bp_refs[0])               # p(x | z0)
        pdistx_ref[...] = p
        psamplex_ref[...] = bernoulli(p, draw, nx, nxp); draw += 1

    return kernel


# ----------------------------------------------------------------------------
# Parameter construction (deterministic, mirrors the shapes in __init__),
# plus one-time padding / transposition into the layout the kernel consumes.
# ----------------------------------------------------------------------------
def init_dbn_params(key, nx, nzs):
    L = len(nzs)
    dims_in = [nx] + list(nzs[:-1])
    Ws, bq, bp = [], [], []
    for l in range(L):
        key, k1, k2, k3 = jax.random.split(key, 4)
        wr = 1.0 / jnp.sqrt(float(dims_in[l]))
        Ws.append(jax.random.uniform(k1, (nzs[l], dims_in[l]),
                                     minval=-wr, maxval=wr, dtype=jnp.float32))
        bq.append(jax.random.uniform(k2, (nzs[l],),
                                     minval=-wr, maxval=wr, dtype=jnp.float32))
        bp.append(jax.random.uniform(k3, (dims_in[l],),
                                     minval=-wr, maxval=wr, dtype=jnp.float32))
    return {"Ws": Ws, "bq": bq, "bp": bp}


def prepare_padded_params(params, nx, nzs):
    """Pad weights/biases to 128-lane multiples and pre-transpose the encode
    weights ONCE (no per-forward .T / re-upload)."""
    L = len(nzs)
    nxp = _round_up(nx, LANE)
    nzps = [_round_up(n, LANE) for n in nzs]
    dims_in = [nx] + list(nzs[:-1])
    dims_in_p = [nxp] + nzps[:-1]

    Wt, W, bq, bp = [], [], [], []
    for l in range(L):
        Wp = _pad2d(params["Ws"][l], (nzps[l], dims_in_p[l]))   # (Dout_p, Din_p)
        W.append(Wp)            # decode: h @ Wp
        Wt.append(Wp.T)         # encode: z @ Wp.T   (transposed once, at init)
        bq.append(_pad2d(params["bq"][l].reshape(1, -1), (1, nzps[l])))
        bp.append(_pad2d(params["bp"][l].reshape(1, -1), (1, dims_in_p[l])))
    return {"nx": nx, "nzs": tuple(nzs), "nxp": nxp, "nzps": nzps,
            "Wt": Wt, "W": W, "bq": bq, "bp": bp}


# ----------------------------------------------------------------------------
# Forward pass (compute_loss=False path of _deprecated_DBN.forward).
# ----------------------------------------------------------------------------
def dbn_forward(padded, xin_dist, key):
    nx, nzs = padded["nx"], padded["nzs"]
    nxp, nzps = padded["nxp"], padded["nzps"]
    L = len(nzs)
    B = xin_dist.shape[0]
    dmax = max([nxp] + list(nzps))
    ndraws = 2 * L + 1

    # All randomness drawn once, host/XLA side (portable across TPU gens and
    # the interpret sandbox); kernel just compares uniforms against dists.
    u = jax.random.uniform(key, (ndraws, B, dmax), dtype=jnp.float32)
    xdist_p = _pad2d(xin_dist, (B, nxp))

    kernel = _make_fused_kernel(B, nx, nzs, nxp, nzps)
    vmem = pl.BlockSpec(memory_space=pltpu.MemorySpace.VMEM)
    n_in = 2 + 4 * L

    out_shapes = (
        jax.ShapeDtypeStruct((B, nxp), jnp.float32),      # xin
        jax.ShapeDtypeStruct((B, nzps[0]), jnp.float32),  # q(z0|x) dist
        jax.ShapeDtypeStruct((B, nzps[0]), jnp.float32),  # z0 sample
        jax.ShapeDtypeStruct((B, nxp), jnp.float32),      # p(x|z0) dist
        jax.ShapeDtypeStruct((B, nxp), jnp.float32),      # x reconstruction sample
    )

    xin_p, qd0, qs0, pdx, psx = pl.pallas_call(
        kernel,
        out_shape=out_shapes,
        in_specs=[vmem] * n_in,
        out_specs=tuple([vmem] * 5),
    )(xdist_p, u, *padded["Wt"], *padded["W"], *padded["bq"], *padded["bp"])

    # Slice padded lanes off before handing results back.
    return (xin_p[:, :nx],
            qd0[:, :nzs[0]], qs0[:, :nzs[0]],
            pdx[:, :nx], psx[:, :nx],
            None)


if __name__ == "__main__":
    # Small, TPU-friendly DBN: nx=128 visible units, two hidden layers (64, 32).
    B, NX = 8, 128
    NZS = (64, 32)

    key = jax.random.PRNGKey(0)
    key, kp, kx, ks = jax.random.split(key, 4)
    params = init_dbn_params(kp, NX, NZS)
    padded = prepare_padded_params(params, NX, NZS)
    xin_dist = jax.random.uniform(kx, (B, NX), dtype=jnp.float32)

    outs = dbn_forward(padded, xin_dist, ks)
    xin, q_dist0, q_sample0, p_dist_x, p_sample_x, _ = outs
    jax.block_until_ready((xin, q_dist0, q_sample0, p_dist_x, p_sample_x))

    # Basic sanity checks on shapes / value ranges.
    assert xin.shape == (B, NX)
    assert q_dist0.shape == (B, NZS[0]) and q_sample0.shape == (B, NZS[0])
    assert p_dist_x.shape == (B, NX) and p_sample_x.shape == (B, NX)
    assert bool(jnp.all((xin == 0.0) | (xin == 1.0)))
    assert bool(jnp.all((q_sample0 == 0.0) | (q_sample0 == 1.0)))
    assert bool(jnp.all((p_sample_x == 0.0) | (p_sample_x == 1.0)))
    assert bool(jnp.all((q_dist0 > 0.0) & (q_dist0 < 1.0)))
    assert bool(jnp.all((p_dist_x > 0.0) & (p_dist_x < 1.0)))
    print("KERNEL_OK")
</pallas_src>

<mosaic_0001>
module attributes {stable_mosaic.version = 11 : i64} {
  func.func @kernel(%arg0: memref<8x128xf32, #tpu.memory_space<vmem>>, %arg1: memref<5x8x128xf32, #tpu.memory_space<vmem>>, %arg2: memref<128x128xf32, #tpu.memory_space<vmem>>, %arg3: memref<128x128xf32, #tpu.memory_space<vmem>>, %arg4: memref<128x128xf32, #tpu.memory_space<vmem>>, %arg5: memref<128x128xf32, #tpu.memory_space<vmem>>, %arg6: memref<1x128xf32, #tpu.memory_space<vmem>>, %arg7: memref<1x128xf32, #tpu.memory_space<vmem>>, %arg8: memref<1x128xf32, #tpu.memory_space<vmem>>, %arg9: memref<1x128xf32, #tpu.memory_space<vmem>>, %arg10: memref<8x128xf32, #tpu.memory_space<vmem>>, %arg11: memref<8x128xf32, #tpu.memory_space<vmem>>, %arg12: memref<8x128xf32, #tpu.memory_space<vmem>>, %arg13: memref<8x128xf32, #tpu.memory_space<vmem>>, %arg14: memref<8x128xf32, #tpu.memory_space<vmem>>) attributes {dimension_semantics = [], scalar_prefetch = 0 : i64, scratch_operands = 0 : i64, tpu.core_type = #tpu.core_type<tc>} {
    %c0 = arith.constant 0 : index
    %c0_0 = arith.constant 0 : index
    %0 = vector.load %arg0[%c0, %c0_0] : memref<8x128xf32, #tpu.memory_space<vmem>>, vector<8x128xf32>
    %c0_1 = arith.constant 0 : index
    %c0_2 = arith.constant 0 : index
    %c0_3 = arith.constant 0 : index
    %1 = vector.load %arg1[%c0_1, %c0_2, %c0_3] : memref<5x8x128xf32, #tpu.memory_space<vmem>>, vector<1x8x128xf32>
    %2 = vector.shape_cast %1 : vector<1x8x128xf32> to vector<8x128xf32>
    %3 = arith.cmpf olt, %2, %0 : vector<8x128xf32>
    %4 = arith.extui %3 : vector<8x128xi1> to vector<8x128xi32>
    %5 = arith.sitofp %4 : vector<8x128xi32> to vector<8x128xf32>
    %c0_4 = arith.constant 0 : index
    %c0_5 = arith.constant 0 : index
    %6 = vector.load %arg10[%c0_4, %c0_5] : memref<8x128xf32, #tpu.memory_space<vmem>>, vector<8x128xf32>
    tpu.vector_store %arg10[%c0_4, %c0_5], %5 {strides = array<i32>} : memref<8x128xf32, #tpu.memory_space<vmem>>, vector<8x128xf32>,
    %c0_6 = arith.constant 0 : index
    %c0_7 = arith.constant 0 : index
    %7 = vector.load %arg2[%c0_6, %c0_7] : memref<128x128xf32, #tpu.memory_space<vmem>>, vector<128x128xf32>
    %cst = arith.constant dense<0.000000e+00> : vector<8x128xf32>
    %8 = tpu.matmul %5, %7, %cst {dimension_numbers = #tpu.dot_dimension_numbers<[1], [0], [0], [1], [0, 0, 1, 1], [], []>} : vector<8x128xf32>, vector<128x128xf32>, vector<8x128xf32> -> vector<8x128xf32>
    %c0_8 = arith.constant 0 : index
    %c0_9 = arith.constant 0 : index
    %9 = vector.load %arg6[%c0_8, %c0_9] : memref<1x128xf32, #tpu.memory_space<vmem>>, vector<1x128xf32>
    %10 = vector.broadcast %9 : vector<1x128xf32> to vector<8x128xf32>
    %11 = arith.addf %8, %10 : vector<8x128xf32>
    %cst_10 = arith.constant 0.000000e+00 : f32
    %12 = vector.broadcast %cst_10 : f32 to vector<8x128xf32>
    %13 = arith.subf %12, %11 : vector<8x128xf32>
    %14 = math.exp %13 : vector<8x128xf32>
    %cst_11 = arith.constant 1.000000e+00 : f32
    %15 = vector.broadcast %cst_11 : f32 to vector<8x128xf32>
    %16 = arith.addf %15, %14 : vector<8x128xf32>
    %cst_12 = arith.constant 1.000000e+00 : f32
    %17 = vector.broadcast %cst_12 : f32 to vector<8x128xf32>
    %18 = arith.divf %17, %16 : vector<8x128xf32>
    %cst_13 = arith.constant 0.999997973 : f32
    %19 = vector.broadcast %cst_13 : f32 to vector<8x128xf32>
    %20 = arith.mulf %18, %19 : vector<8x128xf32>
    %cst_14 = arith.constant 9.99999997E-7 : f32
    %21 = vector.broadcast %cst_14 : f32 to vector<8x128xf32>
    %22 = arith.addf %20, %21 : vector<8x128xf32>
    %c1 = arith.constant 1 : index
    %c0_15 = arith.constant 0 : index
    %c0_16 = arith.constant 0 : index
    %23 = vector.load %arg1[%c1, %c0_15, %c0_16] : memref<5x8x128xf32, #tpu.memory_space<vmem>>, vector<1x8x128xf32>
    %24 = vector.shape_cast %23 : vector<1x8x128xf32> to vector<8x128xf32>
    %25 = arith.cmpf olt, %24, %22 : vector<8x128xf32>
    %26 = arith.extui %25 : vector<8x128xi1> to vector<8x128xi32>
    %27 = arith.sitofp %26 : vector<8x128xi32> to vector<8x128xf32>
    %28 = tpu.iota {dimensions = array<i32: 1>} : vector<8x128xi32>
    %c64_i32 = arith.constant 64 : i32
    %29 = vector.broadcast %c64_i32 : i32 to vector<8x128xi32>
    %30 = arith.cmpi slt, %28, %29 : vector<8x128xi32>
    %cst_17 = arith.constant 0.000000e+00 : f32
    %31 = vector.broadcast %cst_17 : f32 to vector<8x128xf32>
    %32 = arith.select %30, %27, %31 : vector<8x128xi1>, vector<8x128xf32>
    %c0_18 = arith.constant 0 : index
    %c0_19 = arith.constant 0 : index
    %33 = vector.load %arg11[%c0_18, %c0_19] : memref<8x128xf32, #tpu.memory_space<vmem>>, vector<8x128xf32>
    tpu.vector_store %arg11[%c0_18, %c0_19], %22 {strides = array<i32>} : memref<8x128xf32, #tpu.memory_space<vmem>>, vector<8x128xf32>,
    %c0_20 = arith.constant 0 : index
    %c0_21 = arith.constant 0 : index
    %34 = vector.load %arg12[%c0_20, %c0_21] : memref<8x128xf32, #tpu.memory_space<vmem>>, vector<8x128xf32>
    tpu.vector_store %arg12[%c0_20, %c0_21], %32 {strides = array<i32>} : memref<8x128xf32, #tpu.memory_space<vmem>>, vector<8x128xf32>,
    %c0_22 = arith.constant 0 : index
    %c0_23 = arith.constant 0 : index
    %35 = vector.load %arg3[%c0_22, %c0_23] : memref<128x128xf32, #tpu.memory_space<vmem>>, vector<128x128xf32>
    %cst_24 = arith.constant dense<0.000000e+00> : vector<8x128xf32>
    %36 = tpu.matmul %32, %35, %cst_24 {dimension_numbers = #tpu.dot_dimension_numbers<[1], [0], [0], [1], [0, 0, 1, 1], [], []>} : vector<8x128xf32>, vector<128x128xf32>, vector<8x128xf32> -> vector<8x128xf32>
    %c0_25 = arith.constant 0 : index
    %c0_26 = arith.constant 0 : index
    %37 = vector.load %arg7[%c0_25, %c0_26] : memref<1x128xf32, #tpu.memory_space<vmem>>, vector<1x128xf32>
    %38 = vector.broadcast %37 : vector<1x128xf32> to vector<8x128xf32>
    %39 = arith.addf %36, %38 : vector<8x128xf32>
    %cst_27 = arith.constant 0.000000e+00 : f32
    %40 = vector.broadcast %cst_27 : f32 to vector<8x128xf32>
    %41 = arith.subf %40, %39 : vector<8x128xf32>
    %42 = math.exp %41 : vector<8x128xf32>
    %cst_28 = arith.constant 1.000000e+00 : f32
    %43 = vector.broadcast %cst_28 : f32 to vector<8x128xf32>
    %44 = arith.addf %43, %42 : vector<8x128xf32>
    %cst_29 = arith.constant 1.000000e+00 : f32
    %45 = vector.broadcast %cst_29 : f32 to vector<8x128xf32>
    %46 = arith.divf %45, %44 : vector<8x128xf32>
    %cst_30 = arith.constant 0.999997973 : f32
    %47 = vector.broadcast %cst_30 : f32 to vector<8x128xf32>
    %48 = arith.mulf %46, %47 : vector<8x128xf32>
    %cst_31 = arith.constant 9.99999997E-7 : f32
    %49 = vector.broadcast %cst_31 : f32 to vector<8x128xf32>
    %50 = arith.addf %48, %49 : vector<8x128xf32>
    %c2 = arith.constant 2 : index
    %c0_32 = arith.constant 0 : index
    %c0_33 = arith.constant 0 : index
    %51 = vector.load %arg1[%c2, %c0_32, %c0_33] : memref<5x8x128xf32, #tpu.memory_space<vmem>>, vector<1x8x128xf32>
    %52 = vector.shape_cast %51 : vector<1x8x128xf32> to vector<8x128xf32>
    %53 = arith.cmpf olt, %52, %50 : vector<8x128xf32>
    %54 = arith.extui %53 : vector<8x128xi1> to vector<8x128xi32>
    %55 = arith.sitofp %54 : vector<8x128xi32> to vector<8x128xf32>
    %56 = tpu.iota {dimensions = array<i32: 1>} : vector<8x128xi32>
    %c32_i32 = arith.constant 32 : i32
    %57 = vector.broadcast %c32_i32 : i32 to vector<8x128xi32>
    %58 = arith.cmpi slt, %56, %57 : vector<8x128xi32>
    %cst_34 = arith.constant 0.000000e+00 : f32
    %59 = vector.broadcast %cst_34 : f32 to vector<8x128xf32>
    %60 = arith.select %58, %55, %59 : vector<8x128xi1>, vector<8x128xf32>
    %c0_35 = arith.constant 0 : index
    %c0_36 = arith.constant 0 : index
    %61 = vector.load %arg5[%c0_35, %c0_36] : memref<128x128xf32, #tpu.memory_space<vmem>>, vector<128x128xf32>
    %cst_37 = arith.constant dense<0.000000e+00> : vector<8x128xf32>
    %62 = tpu.matmul %60, %61, %cst_37 {dimension_numbers = #tpu.dot_dimension_numbers<[1], [0], [0], [1], [0, 0, 1, 1], [], []>} : vector<8x128xf32>, vector<128x128xf32>, vector<8x128xf32> -> vector<8x128xf32>
    %c0_38 = arith.constant 0 : index
    %c0_39 = arith.constant 0 : index
    %63 = vector.load %arg9[%c0_38, %c0_39] : memref<1x128xf32, #tpu.memory_space<vmem>>, vector<1x128xf32>
    %64 = vector.broadcast %63 : vector<1x128xf32> to vector<8x128xf32>
    %65 = arith.addf %62, %64 : vector<8x128xf32>
    %cst_40 = arith.constant 0.000000e+00 : f32
    %66 = vector.broadcast %cst_40 : f32 to vector<8x128xf32>
    %67 = arith.subf %66, %65 : vector<8x128xf32>
    %68 = math.exp %67 : vector<8x128xf32>
    %cst_41 = arith.constant 1.000000e+00 : f32
    %69 = vector.broadcast %cst_41 : f32 to vector<8x128xf32>
    %70 = arith.addf %69, %68 : vector<8x128xf32>
    %cst_42 = arith.constant 1.000000e+00 : f32
    %71 = vector.broadcast %cst_42 : f32 to vector<8x128xf32>
    %72 = arith.divf %71, %70 : vector<8x128xf32>
    %cst_43 = arith.constant 0.999997973 : f32
    %73 = vector.broadcast %cst_43 : f32 to vector<8x128xf32>
    %74 = arith.mulf %72, %73 : vector<8x128xf32>
    %cst_44 = arith.constant 9.99999997E-7 : f32
    %75 = vector.broadcast %cst_44 : f32 to vector<8x128xf32>
    %76 = arith.addf %74, %75 : vector<8x128xf32>
    %c3 = arith.constant 3 : index
    %c0_45 = arith.constant 0 : index
    %c0_46 = arith.constant 0 : index
    %77 = vector.load %arg1[%c3, %c0_45, %c0_46] : memref<5x8x128xf32, #tpu.memory_space<vmem>>, vector<1x8x128xf32>
    %78 = vector.shape_cast %77 : vector<1x8x128xf32> to vector<8x128xf32>
    %79 = arith.cmpf olt, %78, %76 : vector<8x128xf32>
    %80 = arith.extui %79 : vector<8x128xi1> to vector<8x128xi32>
    %81 = arith.sitofp %80 : vector<8x128xi32> to vector<8x128xf32>
    %82 = tpu.iota {dimensions = array<i32: 1>} : vector<8x128xi32>
    %c64_i32_47 = arith.constant 64 : i32
    %83 = vector.broadcast %c64_i32_47 : i32 to vector<8x128xi32>
    %84 = arith.cmpi slt, %82, %83 : vector<8x128xi32>
    %cst_48 = arith.constant 0.000000e+00 : f32
    %85 = vector.broadcast %cst_48 : f32 to vector<8x128xf32>
    %86 = arith.select %84, %81, %85 : vector<8x128xi1>, vector<8x128xf32>
    %c0_49 = arith.constant 0 : index
    %c0_50 = arith.constant 0 : index
    %87 = vector.load %arg4[%c0_49, %c0_50] : memref<128x128xf32, #tpu.memory_space<vmem>>, vector<128x128xf32>
    %cst_51 = arith.constant dense<0.000000e+00> : vector<8x128xf32>
    %88 = tpu.matmul %86, %87, %cst_51 {dimension_numbers = #tpu.dot_dimension_numbers<[1], [0], [0], [1], [0, 0, 1, 1], [], []>} : vector<8x128xf32>, vector<128x128xf32>, vector<8x128xf32> -> vector<8x128xf32>
    %c0_52 = arith.constant 0 : index
    %c0_53 = arith.constant 0 : index
    %89 = vector.load %arg8[%c0_52, %c0_53] : memref<1x128xf32, #tpu.memory_space<vmem>>, vector<1x128xf32>
    %90 = vector.broadcast %89 : vector<1x128xf32> to vector<8x128xf32>
    %91 = arith.addf %88, %90 : vector<8x128xf32>
    %cst_54 = arith.constant 0.000000e+00 : f32
    %92 = vector.broadcast %cst_54 : f32 to vector<8x128xf32>
    %93 = arith.subf %92, %91 : vector<8x128xf32>
    %94 = math.exp %93 : vector<8x128xf32>
    %cst_55 = arith.constant 1.000000e+00 : f32
    %95 = vector.broadcast %cst_55 : f32 to vector<8x128xf32>
    %96 = arith.addf %95, %94 : vector<8x128xf32>
    %cst_56 = arith.constant 1.000000e+00 : f32
    %97 = vector.broadcast %cst_56 : f32 to vector<8x128xf32>
    %98 = arith.divf %97, %96 : vector<8x128xf32>
    %cst_57 = arith.constant 0.999997973 : f32
    %99 = vector.broadcast %cst_57 : f32 to vector<8x128xf32>
    %100 = arith.mulf %98, %99 : vector<8x128xf32>
    %cst_58 = arith.constant 9.99999997E-7 : f32
    %101 = vector.broadcast %cst_58 : f32 to vector<8x128xf32>
    %102 = arith.addf %100, %101 : vector<8x128xf32>
    %c0_59 = arith.constant 0 : index
    %c0_60 = arith.constant 0 : index
    %103 = vector.load %arg13[%c0_59, %c0_60] : memref<8x128xf32, #tpu.memory_space<vmem>>, vector<8x128xf32>
    tpu.vector_store %arg13[%c0_59, %c0_60], %102 {strides = array<i32>} : memref<8x128xf32, #tpu.memory_space<vmem>>, vector<8x128xf32>,
    %c4 = arith.constant 4 : index
    %c0_61 = arith.constant 0 : index
    %c0_62 = arith.constant 0 : index
    %104 = vector.load %arg1[%c4, %c0_61, %c0_62] : memref<5x8x128xf32, #tpu.memory_space<vmem>>, vector<1x8x128xf32>
    %105 = vector.shape_cast %104 : vector<1x8x128xf32> to vector<8x128xf32>
    %106 = arith.cmpf olt, %105, %102 : vector<8x128xf32>
    %107 = arith.extui %106 : vector<8x128xi1> to vector<8x128xi32>
    %108 = arith.sitofp %107 : vector<8x128xi32> to vector<8x128xf32>
    %c0_63 = arith.constant 0 : index
    %c0_64 = arith.constant 0 : index
    %109 = vector.load %arg14[%c0_63, %c0_64] : memref<8x128xf32, #tpu.memory_space<vmem>>, vector<8x128xf32>
    tpu.vector_store %arg14[%c0_63, %c0_64], %108 {strides = array<i32>} : memref<8x128xf32, #tpu.memory_space<vmem>>, vector<8x128xf32>,
    return
  }
}

</mosaic_0001>

<llo_original>
// kernel: tpu_custom_call.1
$region0: #{tpu_custom_call.1}
  #allocation0 [shape = 'u32[]', space=smem, size = 0x4, offset = 0x4, fixed_abs, tag = 'smem constant byte address 0x4 - core index']
  #allocation1 [shape = 'u32[144,128]{1,0:T(1,128)}', space=vmem, size = 0x12000, scoped, tag = 'internal scratch']
  %s0 = inlined_call_operand.hbm [shape: f32[8,128], index: 0, kind: input, shape index: {}]
  %s1 = inlined_call_operand.hbm [shape: f32[5,8,128], index: 1, kind: input, shape index: {}]
  %s2 = inlined_call_operand.hbm [shape: f32[128,128], index: 2, kind: input, shape index: {}]
  %s3 = inlined_call_operand.hbm [shape: f32[128,128], index: 3, kind: input, shape index: {}]
  %s4 = inlined_call_operand.hbm [shape: f32[128,128], index: 4, kind: input, shape index: {}]
  %s5 = inlined_call_operand.hbm [shape: f32[128,128], index: 5, kind: input, shape index: {}]
  %s6 = inlined_call_operand.vmem [shape: f32[1,128], index: 6, kind: input, shape index: {}]
  %s7 = inlined_call_operand.vmem [shape: f32[1,128], index: 7, kind: input, shape index: {}]
  %s8 = inlined_call_operand.vmem [shape: f32[1,128], index: 8, kind: input, shape index: {}]
  %s9 = inlined_call_operand.vmem [shape: f32[1,128], index: 9, kind: input, shape index: {}]
  %s10 = inlined_call_operand.hbm [shape: f32[8,128], index: 10, kind: output, shape index: {0}]
  %s11 = inlined_call_operand.hbm [shape: f32[8,128], index: 11, kind: output, shape index: {1}]
  %s12 = inlined_call_operand.hbm [shape: f32[8,128], index: 12, kind: output, shape index: {2}]
  %s13 = inlined_call_operand.hbm [shape: f32[8,128], index: 13, kind: output, shape index: {3}]
  %s14 = inlined_call_operand.hbm [shape: f32[8,128], index: 14, kind: output, shape index: {4}]
  %15 = xla_tuple %s10, %s11, %s12, %s13, %s14
  %s16 = sld [smem:[#allocation0]]
  $region106: #{tpu_custom_call.1} parent=0
    _
  %s18 = ssub.s32 1, %s16
  %s19 = scalar_select 0, %s18, %s16
  $region1: #{tpu_custom_call.1} parent=0
    #allocation2 [shape = 'u8[4096]{0}', space=vmem, size = 0x1000, scoped, tag = 'input window, operand 0, single buffered']
    #allocation3 [shape = 's32[1]{0}', space=sflag, size = 0x4, scoped, tag = 'scoped memory for tpu_custom_call.1']
    #allocation4 [shape = 's32[1]{0}', space=sflag, size = 0x4, scoped, tag = 'scoped memory for tpu_custom_call.1']
    #allocation5 [shape = 'u8[20480]{0}', space=vmem, size = 0x5000, scoped, tag = 'input window, operand 1, single buffered']
    #allocation6 [shape = 's32[1]{0}', space=sflag, size = 0x4, scoped, tag = 'scoped memory for tpu_custom_call.1']
    #allocation7 [shape = 'u8[65536]{0}', space=vmem, size = 0x10000, scoped, tag = 'input window, operand 2, single buffered']
    #allocation8 [shape = 'u8[65536]{0}', space=vmem, size = 0x10000, scoped, tag = 'input window, operand 3, single buffered']
    #allocation9 [shape = 's32[1]{0}', space=sflag, size = 0x4, scoped, tag = 'scoped memory for tpu_custom_call.1']
    #allocation10 [shape = 'u8[65536]{0}', space=vmem, size = 0x10000, scoped, tag = 'input window, operand 4, single buffered']
    #allocation11 [shape = 'u8[65536]{0}', space=vmem, size = 0x10000, scoped, tag = 'input window, operand 5, single buffered']
    #allocation12 [shape = 's32[1]{0}', space=sflag, size = 0x4, scoped, tag = 'scoped memory for tpu_custom_call.1']
    #allocation13 [shape = 'u8[4096]{0}', space=vmem, size = 0x1000, scoped, tag = 'output window, operand 0, single buffered']
    #allocation14 [shape = 'u8[4096]{0}', space=vmem, size = 0x1000, scoped, tag = 'output window, operand 1, single buffered']
    #allocation15 [shape = 's32[1]{0}', space=sflag, size = 0x4, scoped, tag = 'scoped memory for tpu_custom_call.1']
    #allocation16 [shape = 'u8[4096]{0}', space=vmem, size = 0x1000, scoped, tag = 'output window, operand 2, single buffered']
    #allocation17 [shape = 'u8[4096]{0}', space=vmem, size = 0x1000, scoped, tag = 'output window, operand 3, single buffered']
    #allocation18 [shape = 's32[1]{0}', space=sflag, size = 0x4, scoped, tag = 'scoped memory for tpu_custom_call.1']
    #allocation19 [shape = 'u8[4096]{0}', space=vmem, size = 0x1000, scoped, tag = 'output window, operand 4, single buffered']
    %20 = vsyncpa [#allocation3], 0
    %21 = vsyncpa [#allocation6], 0
    %22 = vsyncpa [#allocation9], 0
    %23 = vsyncpa [#allocation12], 0
    %24 = vsyncpa [#allocation4], 0
    %25 = vsyncpa [#allocation15], 0
    %26 = vsyncpa [#allocation18], 0
    // Predicated region
    $region2: #{tpu_custom_call.1} parent=1 // pred_check
      _
    $region3: #{tpu_custom_call.1} parent=1 // pred_check_branch
      %28 = sbr.rel (0) target = $region5
    $region4: #{tpu_custom_call.1} parent=1 // pred_region
      %s30 = ssub.s32 128, 128
      %31 = vsyncadd [#allocation3], %s30
      %s33 = sshll.u32 [#allocation2], 4
      %s34 = int_to_ptr.vmem [resolvable:$true] %s33
      %36 = dma.hbm_to_vmem [thread:$0]  %s0, 128, %s34, [#allocation3]
    $region5: #{tpu_custom_call.1} parent=1 // pred_fallthru
      _
    // Predicated region
    $region6: #{tpu_custom_call.1} parent=1 // pred_check
      _
    $region7: #{tpu_custom_call.1} parent=1 // pred_check_branch
      %38 = sbr.rel (0) target = $region9
    $region8: #{tpu_custom_call.1} parent=1 // pred_region
      %s40 = ssub.s32 640, 640
      %41 = vsyncadd [#allocation6], %s40
      %s42 = sshll.u32 [#allocation5], 4
      %s43 = int_to_ptr.vmem [resolvable:$true] %s42
      %48 = dma.hbm_to_vmem [thread:$0]  %s1, 640, %s43, [#allocation6], 128, 128, 8
    $region9: #{tpu_custom_call.1} parent=1 // pred_fallthru
      _
    // Predicated region
    $region10: #{tpu_custom_call.1} parent=1 // pred_check
      _
    $region11: #{tpu_custom_call.1} parent=1 // pred_check_branch
      %50 = sbr.rel (0) target = $region13
    $region12: #{tpu_custom_call.1} parent=1 // pred_region
      %s52 = ssub.s32 2048, 2048
      %53 = vsyncadd [#allocation6], %s52
      %s54 = sshll.u32 [#allocation7], 4
      %s55 = int_to_ptr.vmem [resolvable:$true] %s54
      %60 = dma.hbm_to_vmem [thread:$0]  %s2, 2048, %s55, [#allocation6], 128, 128, 8
    $region13: #{tpu_custom_call.1} parent=1 // pred_fallthru
      _
    // Predicated region
    $region14: #{tpu_custom_call.1} parent=1 // pred_check
      _
    $region15: #{tpu_custom_call.1} parent=1 // pred_check_branch
      %62 = sbr.rel (0) target = $region17
    $region16: #{tpu_custom_call.1} parent=1 // pred_region
      %s64 = ssub.s32 2048, 2048
      %65 = vsyncadd [#allocation9], %s64
      %s66 = sshll.u32 [#allocation8], 4
      %s67 = int_to_ptr.vmem [resolvable:$true] %s66
      %72 = dma.hbm_to_vmem [thread:$0]  %s3, 2048, %s67, [#allocation9], 128, 128, 8
    $region17: #{tpu_custom_call.1} parent=1 // pred_fallthru
      _
    // Predicated region
    $region18: #{tpu_custom_call.1} parent=1 // pred_check
      _
    $region19: #{tpu_custom_call.1} parent=1 // pred_check_branch
      %74 = sbr.rel (0) target = $region21
    $region20: #{tpu_custom_call.1} parent=1 // pred_region
      %s76 = ssub.s32 2048, 2048
      %77 = vsyncadd [#allocation9], %s76
      %s78 = sshll.u32 [#allocation10], 4
      %s79 = int_to_ptr.vmem [resolvable:$true] %s78
      %84 = dma.hbm_to_vmem [thread:$0]  %s4, 2048, %s79, [#allocation9], 128, 128, 8
    $region21: #{tpu_custom_call.1} parent=1 // pred_fallthru
      _
    // Predicated region
    $region22: #{tpu_custom_call.1} parent=1 // pred_check
      _
    $region23: #{tpu_custom_call.1} parent=1 // pred_check_branch
      %86 = sbr.rel (0) target = $region25
    $region24: #{tpu_custom_call.1} parent=1 // pred_region
      %s88 = ssub.s32 2048, 2048
      %89 = vsyncadd [#allocation12], %s88
      %s90 = sshll.u32 [#allocation11], 4
      %s91 = int_to_ptr.vmem [resolvable:$true] %s90
      %96 = dma.hbm_to_vmem [thread:$0]  %s5, 2048, %s91, [#allocation12], 128, 128, 8
    $region25: #{tpu_custom_call.1} parent=1 // pred_fallthru
      _
    // Predicated region
    $region26: #{tpu_custom_call.1} parent=1 // pred_check
      _
    $region27: #{tpu_custom_call.1} parent=1 // pred_check_branch
      %98 = sbr.rel (0) target = $region29
    $region28: #{tpu_custom_call.1} parent=1 // pred_region
      _
    $region29: #{tpu_custom_call.1} parent=1 // pred_fallthru
      _
    // Predicated region
    $region30: #{tpu_custom_call.1} parent=1 // pred_check
      _
    $region31: #{tpu_custom_call.1} parent=1 // pred_check_branch
      %100 = sbr.rel (0) target = $region33
    $region32: #{tpu_custom_call.1} parent=1 // pred_region
      _
    $region33: #{tpu_custom_call.1} parent=1 // pred_fallthru
      _
    // Predicated region
    $region34: #{tpu_custom_call.1} parent=1 // pred_check
      _
    $region35: #{tpu_custom_call.1} parent=1 // pred_check_branch
      %102 = sbr.rel (0) target = $region37
    $region36: #{tpu_custom_call.1} parent=1 // pred_region
      _
    $region37: #{tpu_custom_call.1} parent=1 // pred_fallthru
      _
    // Predicated region
    $region38: #{tpu_custom_call.1} parent=1 // pred_check
      _
    $region39: #{tpu_custom_call.1} parent=1 // pred_check_branch
      %104 = sbr.rel (0) target = $region41
    $region40: #{tpu_custom_call.1} parent=1 // pred_region
      _
    $region41: #{tpu_custom_call.1} parent=1 // pred_fallthru
      _
    // Predicated region
    $region42: #{tpu_custom_call.1} parent=1 // pred_check
      _
    $region43: #{tpu_custom_call.1} parent=1 // pred_check_branch
      %106 = sbr.rel (0) target = $region45
    $region44: #{tpu_custom_call.1} parent=1 // pred_region
      %107 = dma.done [#allocation3], 128
    $region45: #{tpu_custom_call.1} parent=1 // pred_fallthru
      _
    // Predicated region
    $region46: #{tpu_custom_call.1} parent=1 // pred_check
      _
    $region47: #{tpu_custom_call.1} parent=1 // pred_check_branch
      %109 = sbr.rel (0) target = $region49
    $region48: #{tpu_custom_call.1} parent=1 // pred_region
      %110 = dma.done [#allocation6], 640
    $region49: #{tpu_custom_call.1} parent=1 // pred_fallthru
      _
    // Predicated region
    $region50: #{tpu_custom_call.1} parent=1 // pred_check
      _
    $region51: #{tpu_custom_call.1} parent=1 // pred_check_branch
      %112 = sbr.rel (0) target = $region53
    $region52: #{tpu_custom_call.1} parent=1 // pred_region
      %113 = dma.done [#allocation6], 2048
    $region53: #{tpu_custom_call.1} parent=1 // pred_fallthru
      _
    // Predicated region
    $region54: #{tpu_custom_call.1} parent=1 // pred_check
      _
    $region55: #{tpu_custom_call.1} parent=1 // pred_check_branch
      %115 = sbr.rel (0) target = $region57
    $region56: #{tpu_custom_call.1} parent=1 // pred_region
      %116 = dma.done [#allocation9], 2048
    $region57: #{tpu_custom_call.1} parent=1 // pred_fallthru
      _
    // Predicated region
    $region58: #{tpu_custom_call.1} parent=1 // pred_check
      _
    $region59: #{tpu_custom_call.1} parent=1 // pred_check_branch
      %118 = sbr.rel (0) target = $region61
    $region60: #{tpu_custom_call.1} parent=1 // pred_region
      %119 = dma.done [#allocation9], 2048
    $region61: #{tpu_custom_call.1} parent=1 // pred_fallthru
      _
    // Predicated region
    $region62: #{tpu_custom_call.1} parent=1 // pred_check
      _
    $region63: #{tpu_custom_call.1} parent=1 // pred_check_branch
      %121 = sbr.rel (0) target = $region65
    $region64: #{tpu_custom_call.1} parent=1 // pred_region
      %122 = dma.done [#allocation12], 2048
    $region65: #{tpu_custom_call.1} parent=1 // pred_fallthru
      _
    %v123 = vld [vmem:[#allocation2] sm:$0xff]
    %v124 = vld [vmem:[#allocation5] sm:$0xff]
    %vm125 = vcmp.lt.f32.partialorder %v124, %v123
    %v126 = vsel %vm125, 1, 0
    %v127 = vcvt.s32.f32 %v126
    %128 = vst [vmem:[#allocation13] sm:$0xff] %v127
    %v129 = vld [vmem:[#allocation7] sm:$0xff]
    %v130 = vld [vmem:[#allocation7 + $0x8] sm:$0xff]
    %v131 = vld [vmem:[#allocation7 + $0x10] sm:$0xff]
    %v132 = vld [vmem:[#allocation7 + $0x18] sm:$0xff]
    %v133 = vld [vmem:[#allocation7 + $0x20] sm:$0xff]
    %v134 = vld [vmem:[#allocation7 + $0x28] sm:$0xff]
    %v135 = vld [vmem:[#allocation7 + $0x30] sm:$0xff]
    %v136 = vld [vmem:[#allocation7 + $0x38] sm:$0xff]
    %v137 = vld [vmem:[#allocation7 + $0x40] sm:$0xff]
    %v138 = vld [vmem:[#allocation7 + $0x48] sm:$0xff]
    %v139 = vld [vmem:[#allocation7 + $0x50] sm:$0xff]
    %v140 = vld [vmem:[#allocation7 + $0x58] sm:$0xff]
    %v141 = vld [vmem:[#allocation7 + $0x60] sm:$0xff]
    %v142 = vld [vmem:[#allocation7 + $0x68] sm:$0xff]
    %v143 = vld [vmem:[#allocation7 + $0x70] sm:$0xff]
    %v144 = vld [vmem:[#allocation7 + $0x78] sm:$0xff]
    %v145 = vld [vmem:[%s6] sm:$0x1]
    %v147 = vlaneseq
    %v148 = vshrl.u32 %v147, 7
    %v149 = vsub.s32 0, %v148
    %v150 = vrot.slane %v145, %v149
    %152 = vmatprep.subr.mxu0 0.0
    %153 = vmatpush1.msra.mxu0 %v144
    %154 = vmatprep.subr.mxu0 0.0
    %155 = vmatpush1.msra.mxu0 %v143
    %156 = vmatprep.subr.mxu0 0.0
    %157 = vmatpush1.msra.mxu0 %v142
    %158 = vmatprep.subr.mxu0 0.0
    %159 = vmatpush1.msra.mxu0 %v141
    %160 = vmatprep.subr.mxu0 0.0
    %161 = vmatpush1.msra.mxu0 %v140
    %162 = vmatprep.subr.mxu0 0.0
    %163 = vmatpush1.msra.mxu0 %v139
    %164 = vmatprep.subr.mxu0 0.0
    %165 = vmatpush1.msra.mxu0 %v138
    %166 = vmatprep.subr.mxu0 0.0
    %167 = vmatpush1.msra.mxu0 %v137
    %168 = vmatprep.subr.mxu0 0.0
    %169 = vmatpush1.msra.mxu0 %v136
    %170 = vmatprep.subr.mxu0 0.0
    %171 = vmatpush1.msra.mxu0 %v135
    %172 = vmatprep.subr.mxu0 0.0
    %173 = vmatpush1.msra.mxu0 %v134
    %174 = vmatprep.subr.mxu0 0.0
    %175 = vmatpush1.msra.mxu0 %v133
    %176 = vmatprep.subr.mxu0 0.0
    %177 = vmatpush1.msra.mxu0 %v132
    %178 = vmatprep.subr.mxu0 0.0
    %179 = vmatpush1.msra.mxu0 %v131
    %180 = vmatprep.subr.mxu0 0.0
    %181 = vmatpush1.msra.mxu0 %v130
    %182 = vmatprep.subr.mxu0 0.0
    %183 = vmatpush1.msra.mxu0 %v129
    %184 = vmatprep.subr.mxu0 0.0
    %185 = vmatpush2.msra.mxu0 0.0
    %186 = vmatprep.subr.mxu0 0.0
    %187 = vmatpush2.msra.mxu0 0.0
    %188 = vmatprep.subr.mxu0 0.0
    %189 = vmatpush2.msra.mxu0 0.0
    %190 = vmatprep.subr.mxu0 0.0
    %191 = vmatpush2.msra.mxu0 0.0
    %192 = vmatprep.subr.mxu0 0.0
    %193 = vmatpush2.msra.mxu0 0.0
    %194 = vmatprep.subr.mxu0 0.0
    %195 = vmatpush2.msra.mxu0 0.0
    %196 = vmatprep.subr.mxu0 0.0
    %197 = vmatpush2.msra.mxu0 0.0
    %198 = vmatprep.subr.mxu0 0.0
    %199 = vmatpush2.msra.mxu0 0.0
    %200 = vmatprep.subr.mxu0 0.0
    %201 = vmatpush2.msra.mxu0 0.0
    %202 = vmatprep.subr.mxu0 0.0
    %203 = vmatpush2.msra.mxu0 0.0
    %204 = vmatprep.subr.mxu0 0.0
    %205 = vmatpush2.msra.mxu0 0.0
    %206 = vmatprep.subr.mxu0 0.0
    %207 = vmatpush2.msra.mxu0 0.0
    %208 = vmatprep.subr.mxu0 0.0
    %209 = vmatpush2.msra.mxu0 0.0
    %210 = vmatprep.subr.mxu0 0.0
    %211 = vmatpush2.msra.mxu0 0.0
    %212 = vmatprep.subr.mxu0 0.0
    %213 = vmatpush2.msra.mxu0 0.0
    %214 = vmatprep.subr.mxu0 0.0
    %215 = vmatpush2.msra.mxu0 0.0
    %216 = vmatprep.mubr.f32.mxu0 0.0
    %217 = vmatmul.mubr.f32.gmra.mxu0 %v127
    %v218 = vpop.f32.mrf.mxu0
    %v219 = vadd.f32 %v150, %v218
    %v220 = vpop.f32.mrf.mxu0
    %221 = vdwg.mxu0
    %v222 = vsub.f32 0.0, %v219
    %v223 = vmul.f32 %v222, 1.442695
    %v224 = vpow.pop %v223
    %v225 = vadd.f32 %v224, 1.0
    %v226 = vrcp.pop %v225
    %v227 = vmul.f32 1.0, %v226
    %v228 = vmul.f32 %v227, 0.999998
    %v229 = vadd.f32 %v228, 1e-06
    %s230 = scalar_lea.vmem [#allocation5], 8
    %v231 = vld [vmem:[%s230] sm:$0xff]
    %vm232 = vcmp.lt.f32.partialorder %v231, %v229
    %v233 = vsel %vm232, 1, 0
    %v234 = vcvt.s32.f32 %v233
    %v235 = vlaneseq
    %v236 = vand.u32 %v235, 127
    %vm237 = vcmp.lt.s32.totalorder %v236, 64
    %v238 = vsel %vm237, %v234, 0.0
    %239 = vst [vmem:[#allocation14] sm:$0xff] %v229
    %240 = vst [vmem:[#allocation16] sm:$0xff] %v238
    %v241 = vld [vmem:[#allocation8] sm:$0xff]
    %v242 = vld [vmem:[#allocation8 + $0x8] sm:$0xff]
    %v243 = vld [vmem:[#allocation8 + $0x10] sm:$0xff]
    %v244 = vld [vmem:[#allocation8 + $0x18] sm:$0xff]
    %v245 = vld [vmem:[#allocation8 + $0x20] sm:$0xff]
    %v246 = vld [vmem:[#allocation8 + $0x28] sm:$0xff]
    %v247 = vld [vmem:[#allocation8 + $0x30] sm:$0xff]
    %v248 = vld [vmem:[#allocation8 + $0x38] sm:$0xff]
    %v249 = vld [vmem:[#allocation8 + $0x40] sm:$0xff]
    %v250 = vld [vmem:[#allocation8 + $0x48] sm:$0xff]
    %v251 = vld [vmem:[#allocation8 + $0x50] sm:$0xff]
    %v252 = vld [vmem:[#allocation8 + $0x58] sm:$0xff]
    %v253 = vld [vmem:[#allocation8 + $0x60] sm:$0xff]
    %v254 = vld [vmem:[#allocation8 + $0x68] sm:$0xff]
    %v255 = vld [vmem:[#allocation8 + $0x70] sm:$0xff]
    %v256 = vld [vmem:[#allocation8 + $0x78] sm:$0xff]
    %v257 = vld [vmem:[%s7] sm:$0x1]
    %v259 = vlaneseq
    %v260 = vshrl.u32 %v259, 7
    %v261 = vsub.s32 0, %v260
    %v262 = vrot.slane %v257, %v261
    %264 = vmatprep.subr.mxu0 0.0
    %265 = vmatpush1.msra.mxu0 %v256
    %266 = vmatprep.subr.mxu0 0.0
    %267 = vmatpush1.msra.mxu0 %v255
    %268 = vmatprep.subr.mxu0 0.0
    %269 = vmatpush1.msra.mxu0 %v254
    %270 = vmatprep.subr.mxu0 0.0
    %271 = vmatpush1.msra.mxu0 %v253
    %272 = vmatprep.subr.mxu0 0.0
    %273 = vmatpush1.msra.mxu0 %v252
    %274 = vmatprep.subr.mxu0 0.0
    %275 = vmatpush1.msra.mxu0 %v251
    %276 = vmatprep.subr.mxu0 0.0
    %277 = vmatpush1.msra.mxu0 %v250
    %278 = vmatprep.subr.mxu0 0.0
    %279 = vmatpush1.msra.mxu0 %v249
    %280 = vmatprep.subr.mxu0 0.0
    %281 = vmatpush1.msra.mxu0 %v248
    %282 = vmatprep.subr.mxu0 0.0
    %283 = vmatpush1.msra.mxu0 %v247
    %284 = vmatprep.subr.mxu0 0.0
    %285 = vmatpush1.msra.mxu0 %v246
    %286 = vmatprep.subr.mxu0 0.0
    %287 = vmatpush1.msra.mxu0 %v245
    %288 = vmatprep.subr.mxu0 0.0
    %289 = vmatpush1.msra.mxu0 %v244
    %290 = vmatprep.subr.mxu0 0.0
    %291 = vmatpush1.msra.mxu0 %v243
    %292 = vmatprep.subr.mxu0 0.0
    %293 = vmatpush1.msra.mxu0 %v242
    %294 = vmatprep.subr.mxu0 0.0
    %295 = vmatpush1.msra.mxu0 %v241
    %296 = vmatprep.subr.mxu0 0.0
    %297 = vmatpush2.msra.mxu0 0.0
    %298 = vmatprep.subr.mxu0 0.0
    %299 = vmatpush2.msra.mxu0 0.0
    %300 = vmatprep.subr.mxu0 0.0
    %301 = vmatpush2.msra.mxu0 0.0
    %302 = vmatprep.subr.mxu0 0.0
    %303 = vmatpush2.msra.mxu0 0.0
    %304 = vmatprep.subr.mxu0 0.0
    %305 = vmatpush2.msra.mxu0 0.0
    %306 = vmatprep.subr.mxu0 0.0
    %307 = vmatpush2.msra.mxu0 0.0
    %308 = vmatprep.subr.mxu0 0.0
    %309 = vmatpush2.msra.mxu0 0.0
    %310 = vmatprep.subr.mxu0 0.0
    %311 = vmatpush2.msra.mxu0 0.0
    %312 = vmatprep.subr.mxu0 0.0
    %313 = vmatpush2.msra.mxu0 0.0
    %314 = vmatprep.subr.mxu0 0.0
    %315 = vmatpush2.msra.mxu0 0.0
    %316 = vmatprep.subr.mxu0 0.0
    %317 = vmatpush2.msra.mxu0 0.0
    %318 = vmatprep.subr.mxu0 0.0
    %319 = vmatpush2.msra.mxu0 0.0
    %320 = vmatprep.subr.mxu0 0.0
    %321 = vmatpush2.msra.mxu0 0.0
    %322 = vmatprep.subr.mxu0 0.0
    %323 = vmatpush2.msra.mxu0 0.0
    %324 = vmatprep.subr.mxu0 0.0
    %325 = vmatpush2.msra.mxu0 0.0
    %326 = vmatprep.subr.mxu0 0.0
    %327 = vmatpush2.msra.mxu0 0.0
    %328 = vmatprep.mubr.f32.mxu0 0.0
    %329 = vmatmul.mubr.f32.gmra.mxu0 %v238
    %v330 = vpop.f32.mrf.mxu0
    %v331 = vadd.f32 %v262, %v330
    %v332 = vpop.f32.mrf.mxu0
    %333 = vdwg.mxu0
    %v334 = vsub.f32 0.0, %v331
    %v335 = vmul.f32 %v334, 1.442695
    %v336 = vpow.pop %v335
    %v337 = vadd.f32 %v336, 1.0
    %v338 = vrcp.pop %v337
    %v339 = vmul.f32 1.0, %v338
    %v340 = vmul.f32 %v339, 0.999998
    %v341 = vadd.f32 %v340, 1e-06
    %s342 = scalar_lea.vmem [#allocation5], 16
    %v343 = vld [vmem:[%s342] sm:$0xff]
    %vm344 = vcmp.lt.f32.partialorder %v343, %v341
    %v345 = vsel %vm344, 1, 0
    %v346 = vcvt.s32.f32 %v345
    %vm347 = vcmp.lt.s32.totalorder %v236, 32
    %v348 = vsel %vm347, %v346, 0.0
    %v349 = vld [vmem:[#allocation11] sm:$0xff]
    %v350 = vld [vmem:[#allocation11 + $0x8] sm:$0xff]
    %v351 = vld [vmem:[#allocation11 + $0x10] sm:$0xff]
    %v352 = vld [vmem:[#allocation11 + $0x18] sm:$0xff]
    %v353 = vld [vmem:[#allocation11 + $0x20] sm:$0xff]
    %v354 = vld [vmem:[#allocation11 + $0x28] sm:$0xff]
    %v355 = vld [vmem:[#allocation11 + $0x30] sm:$0xff]
    %v356 = vld [vmem:[#allocation11 + $0x38] sm:$0xff]
    %v357 = vld [vmem:[#allocation11 + $0x40] sm:$0xff]
    %v358 = vld [vmem:[#allocation11 + $0x48] sm:$0xff]
    %v359 = vld [vmem:[#allocation11 + $0x50] sm:$0xff]
    %v360 = vld [vmem:[#allocation11 + $0x58] sm:$0xff]
    %v361 = vld [vmem:[#allocation11 + $0x60] sm:$0xff]
    %v362 = vld [vmem:[#allocation11 + $0x68] sm:$0xff]
    %v363 = vld [vmem:[#allocation11 + $0x70] sm:$0xff]
    %v364 = vld [vmem:[#allocation11 + $0x78] sm:$0xff]
    %v365 = vld [vmem:[%s9] sm:$0x1]
    %v367 = vlaneseq
    %v368 = vshrl.u32 %v367, 7
    %v369 = vsub.s32 0, %v368
    %v370 = vrot.slane %v365, %v369
    %372 = vmatprep.subr.mxu0 0.0
    %373 = vmatpush1.msra.mxu0 %v364
    %374 = vmatprep.subr.mxu0 0.0
    %375 = vmatpush1.msra.mxu0 %v363
    %376 = vmatprep.subr.mxu0 0.0
    %377 = vmatpush1.msra.mxu0 %v362
    %378 = vmatprep.subr.mxu0 0.0
    %379 = vmatpush1.msra.mxu0 %v361
    %380 = vmatprep.subr.mxu0 0.0
    %381 = vmatpush1.msra.mxu0 %v360
    %382 = vmatprep.subr.mxu0 0.0
    %383 = vmatpush1.msra.mxu0 %v359
    %384 = vmatprep.subr.mxu0 0.0
    %385 = vmatpush1.msra.mxu0 %v358
    %386 = vmatprep.subr.mxu0 0.0
    %387 = vmatpush1.msra.mxu0 %v357
    %388 = vmatprep.subr.mxu0 0.0
    %389 = vmatpush1.msra.mxu0 %v356
    %390 = vmatprep.subr.mxu0 0.0
    %391 = vmatpush1.msra.mxu0 %v355
    %392 = vmatprep.subr.mxu0 0.0
    %393 = vmatpush1.msra.mxu0 %v354
    %394 = vmatprep.subr.mxu0 0.0
    %395 = vmatpush1.msra.mxu0 %v353
    %396 = vmatprep.subr.mxu0 0.0
    %397 = vmatpush1.msra.mxu0 %v352
    %398 = vmatprep.subr.mxu0 0.0
    %399 = vmatpush1.msra.mxu0 %v351
    %400 = vmatprep.subr.mxu0 0.0
    %401 = vmatpush1.msra.mxu0 %v350
    %402 = vmatprep.subr.mxu0 0.0
    %403 = vmatpush1.msra.mxu0 %v349
    %404 = vmatprep.subr.mxu0 0.0
    %405 = vmatpush2.msra.mxu0 0.0
    %406 = vmatprep.subr.mxu0 0.0
    %407 = vmatpush2.msra.mxu0 0.0
    %408 = vmatprep.subr.mxu0 0.0
    %409 = vmatpush2.msra.mxu0 0.0
    %410 = vmatprep.subr.mxu0 0.0
    %411 = vmatpush2.msra.mxu0 0.0
    %412 = vmatprep.subr.mxu0 0.0
    %413 = vmatpush2.msra.mxu0 0.0
    %414 = vmatprep.subr.mxu0 0.0
    %415 = vmatpush2.msra.mxu0 0.0
    %416 = vmatprep.subr.mxu0 0.0
    %417 = vmatpush2.msra.mxu0 0.0
    %418 = vmatprep.subr.mxu0 0.0
    %419 = vmatpush2.msra.mxu0 0.0
    %420 = vmatprep.subr.mxu0 0.0
    %421 = vmatpush2.msra.mxu0 0.0
    %422 = vmatprep.subr.mxu0 0.0
    %423 = vmatpush2.msra.mxu0 0.0
    %424 = vmatprep.subr.mxu0 0.0
    %425 = vmatpush2.msra.mxu0 0.0
    %426 = vmatprep.subr.mxu0 0.0
    %427 = vmatpush2.msra.mxu0 0.0
    %428 = vmatprep.subr.mxu0 0.0
    %429 = vmatpush2.msra.mxu0 0.0
    %430 = vmatprep.subr.mxu0 0.0
    %431 = vmatpush2.msra.mxu0 0.0
    %432 = vmatprep.subr.mxu0 0.0
    %433 = vmatpush2.msra.mxu0 0.0
    %434 = vmatprep.subr.mxu0 0.0
    %435 = vmatpush2.msra.mxu0 0.0
    %436 = vmatprep.mubr.f32.mxu0 0.0
    %437 = vmatmul.mubr.f32.gmra.mxu0 %v348
    %v438 = vpop.f32.mrf.mxu0
    %v439 = vadd.f32 %v370, %v438
    %v440 = vpop.f32.mrf.mxu0
    %441 = vdwg.mxu0
    %v442 = vsub.f32 0.0, %v439
    %v443 = vmul.f32 %v442, 1.442695
    %v444 = vpow.pop %v443
    %v445 = vadd.f32 %v444, 1.0
    %v446 = vrcp.pop %v445
    %v447 = vmul.f32 1.0, %v446
    %v448 = vmul.f32 %v447, 0.999998
    %v449 = vadd.f32 %v448, 1e-06
    %s450 = scalar_lea.vmem [#allocation5], 24
    %v451 = vld [vmem:[%s450] sm:$0xff]
    %vm452 = vcmp.lt.f32.partialorder %v451, %v449
    %v453 = vsel %vm452, 1, 0
    %v454 = vcvt.s32.f32 %v453
    %v455 = vsel %vm237, %v454, 0.0
    %v456 = vld [vmem:[#allocation10] sm:$0xff]
    %v457 = vld [vmem:[#allocation10 + $0x8] sm:$0xff]
    %v458 = vld [vmem:[#allocation10 + $0x10] sm:$0xff]
    %v459 = vld [vmem:[#allocation10 + $0x18] sm:$0xff]
    %v460 = vld [vmem:[#allocation10 + $0x20] sm:$0xff]
    %v461 = vld [vmem:[#allocation10 + $0x28] sm:$0xff]
    %v462 = vld [vmem:[#allocation10 + $0x30] sm:$0xff]
    %v463 = vld [vmem:[#allocation10 + $0x38] sm:$0xff]
    %v464 = vld [vmem:[#allocation10 + $0x40] sm:$0xff]
    %v465 = vld [vmem:[#allocation10 + $0x48] sm:$0xff]
    %v466 = vld [vmem:[#allocation10 + $0x50] sm:$0xff]
    %v467 = vld [vmem:[#allocation10 + $0x58] sm:$0xff]
    %v468 = vld [vmem:[#allocation10 + $0x60] sm:$0xff]
    %v469 = vld [vmem:[#allocation10 + $0x68] sm:$0xff]
    %v470 = vld [vmem:[#allocation10 + $0x70] sm:$0xff]
    %v471 = vld [vmem:[#allocation10 + $0x78] sm:$0xff]
    %v472 = vld [vmem:[%s8] sm:$0x1]
    %v474 = vlaneseq
    %v475 = vshrl.u32 %v474, 7
    %v476 = vsub.s32 0, %v475
    %v477 = vrot.slane %v472, %v476
    %479 = vmatprep.subr.mxu0 0.0
    %480 = vmatpush1.msra.mxu0 %v471
    %481 = vmatprep.subr.mxu0 0.0
    %482 = vmatpush1.msra.mxu0 %v470
    %483 = vmatprep.subr.mxu0 0.0
    %484 = vmatpush1.msra.mxu0 %v469
    %485 = vmatprep.subr.mxu0 0.0
    %486 = vmatpush1.msra.mxu0 %v468
    %487 = vmatprep.subr.mxu0 0.0
    %488 = vmatpush1.msra.mxu0 %v467
    %489 = vmatprep.subr.mxu0 0.0
    %490 = vmatpush1.msra.mxu0 %v466
    %491 = vmatprep.subr.mxu0 0.0
    %492 = vmatpush1.msra.mxu0 %v465
    %493 = vmatprep.subr.mxu0 0.0
    %494 = vmatpush1.msra.mxu0 %v464
    %495 = vmatprep.subr.mxu0 0.0
    %496 = vmatpush1.msra.mxu0 %v463
    %497 = vmatprep.subr.mxu0 0.0
    %498 = vmatpush1.msra.mxu0 %v462
    %499 = vmatprep.subr.mxu0 0.0
    %500 = vmatpush1.msra.mxu0 %v461
    %501 = vmatprep.subr.mxu0 0.0
    %502 = vmatpush1.msra.mxu0 %v460
    %503 = vmatprep.subr.mxu0 0.0
    %504 = vmatpush1.msra.mxu0 %v459
    %505 = vmatprep.subr.mxu0 0.0
    %506 = vmatpush1.msra.mxu0 %v458
    %507 = vmatprep.subr.mxu0 0.0
    %508 = vmatpush1.msra.mxu0 %v457
    %509 = vmatprep.subr.mxu0 0.0
    %510 = vmatpush1.msra.mxu0 %v456
    %511 = vmatprep.subr.mxu0 0.0
    %512 = vmatpush2.msra.mxu0 0.0
    %513 = vmatprep.subr.mxu0 0.0
    %514 = vmatpush2.msra.mxu0 0.0
    %515 = vmatprep.subr.mxu0 0.0
    %516 = vmatpush2.msra.mxu0 0.0
    %517 = vmatprep.subr.mxu0 0.0
    %518 = vmatpush2.msra.mxu0 0.0
    %519 = vmatprep.subr.mxu0 0.0
    %520 = vmatpush2.msra.mxu0 0.0
    %521 = vmatprep.subr.mxu0 0.0
    %522 = vmatpush2.msra.mxu0 0.0
    %523 = vmatprep.subr.mxu0 0.0
    %524 = vmatpush2.msra.mxu0 0.0
    %525 = vmatprep.subr.mxu0 0.0
    %526 = vmatpush2.msra.mxu0 0.0
    %527 = vmatprep.subr.mxu0 0.0
    %528 = vmatpush2.msra.mxu0 0.0
    %529 = vmatprep.subr.mxu0 0.0
    %530 = vmatpush2.msra.mxu0 0.0
    %531 = vmatprep.subr.mxu0 0.0
    %532 = vmatpush2.msra.mxu0 0.0
    %533 = vmatprep.subr.mxu0 0.0
    %534 = vmatpush2.msra.mxu0 0.0
    %535 = vmatprep.subr.mxu0 0.0
    %536 = vmatpush2.msra.mxu0 0.0
    %537 = vmatprep.subr.mxu0 0.0
    %538 = vmatpush2.msra.mxu0 0.0
    %539 = vmatprep.subr.mxu0 0.0
    %540 = vmatpush2.msra.mxu0 0.0
    %541 = vmatprep.subr.mxu0 0.0
    %542 = vmatpush2.msra.mxu0 0.0
    %543 = vmatprep.mubr.f32.mxu0 0.0
    %544 = vmatmul.mubr.f32.gmra.mxu0 %v455
    %v545 = vpop.f32.mrf.mxu0
    %v546 = vadd.f32 %v477, %v545
    %v547 = vpop.f32.mrf.mxu0
    %548 = vdwg.mxu0
    %v549 = vsub.f32 0.0, %v546
    %v550 = vmul.f32 %v549, 1.442695
    %v551 = vpow.pop %v550
    %v552 = vadd.f32 %v551, 1.0
    %v553 = vrcp.pop %v552
    %v554 = vmul.f32 1.0, %v553
    %v555 = vmul.f32 %v554, 0.999998
    %v556 = vadd.f32 %v555, 1e-06
    %557 = vst [vmem:[#allocation17] sm:$0xff] %v556
    %s558 = scalar_lea.vmem [#allocation5], 32
    %v559 = vld [vmem:[%s558] sm:$0xff]
    %vm560 = vcmp.lt.f32.partialorder %v559, %v556
    %v561 = vsel %vm560, 1, 0
    %v562 = vcvt.s32.f32 %v561
    %563 = vst [vmem:[#allocation19] sm:$0xff] %v562
    // Predicated region
    $region66: #{tpu_custom_call.1} parent=1 // pred_check
      _
    $region67: #{tpu_custom_call.1} parent=1 // pred_check_branch
      %565 = sbr.rel (0) target = $region69
    $region68: #{tpu_custom_call.1} parent=1 // pred_region
      %s567 = ssub.s32 128, 128
      %568 = vsyncadd [#allocation4], %s567
      %s570 = sshll.u32 [#allocation13], 4
      %s571 = int_to_ptr.vmem [resolvable:$true] %s570
      %573 = dma.vmem_to_hbm [thread:$0]  %s571, 128, %s10, [#allocation4]
    $region69: #{tpu_custom_call.1} parent=1 // pred_fallthru
      _
    // Predicated region
    $region70: #{tpu_custom_call.1} parent=1 // pred_check
      _
    $region71: #{tpu_custom_call.1} parent=1 // pred_check_branch
      %575 = sbr.rel (0) target = $region73
    $region72: #{tpu_custom_call.1} parent=1 // pred_region
      %s577 = ssub.s32 128, 128
      %578 = vsyncadd [#allocation15], %s577
      %s580 = sshll.u32 [#allocation14], 4
      %s581 = int_to_ptr.vmem [resolvable:$true] %s580
      %583 = dma.vmem_to_hbm [thread:$0]  %s581, 128, %s11, [#allocation15]
    $region73: #{tpu_custom_call.1} parent=1 // pred_fallthru
      _
    // Predicated region
    $region74: #{tpu_custom_call.1} parent=1 // pred_check
      _
    $region75: #{tpu_custom_call.1} parent=1 // pred_check_branch
      %585 = sbr.rel (0) target = $region77
    $region76: #{tpu_custom_call.1} parent=1 // pred_region
      %s587 = ssub.s32 128, 128
      %588 = vsyncadd [#allocation15], %s587
      %s590 = sshll.u32 [#allocation16], 4
      %s591 = int_to_ptr.vmem [resolvable:$true] %s590
      %593 = dma.vmem_to_hbm [thread:$0]  %s591, 128, %s12, [#allocation15]
    $region77: #{tpu_custom_call.1} parent=1 // pred_fallthru
      _
    // Predicated region
    $region78: #{tpu_custom_call.1} parent=1 // pred_check
      _
    $region79: #{tpu_custom_call.1} parent=1 // pred_check_branch
      %595 = sbr.rel (0) target = $region81
    $region80: #{tpu_custom_call.1} parent=1 // pred_region
      %s597 = ssub.s32 128, 128
      %598 = vsyncadd [#allocation18], %s597
      %s600 = sshll.u32 [#allocation17], 4
      %s601 = int_to_ptr.vmem [resolvable:$true] %s600
      %603 = dma.vmem_to_hbm [thread:$0]  %s601, 128, %s13, [#allocation18]
    $region81: #{tpu_custom_call.1} parent=1 // pred_fallthru
      _
    // Predicated region
    $region82: #{tpu_custom_call.1} parent=1 // pred_check
      _
    $region83: #{tpu_custom_call.1} parent=1 // pred_check_branch
      %605 = sbr.rel (0) target = $region85
    $region84: #{tpu_custom_call.1} parent=1 // pred_region
      %s607 = ssub.s32 128, 128
      %608 = vsyncadd [#allocation18], %s607
      %s610 = sshll.u32 [#allocation19], 4
      %s611 = int_to_ptr.vmem [resolvable:$true] %s610
      %613 = dma.vmem_to_hbm [thread:$0]  %s611, 128, %s14, [#allocation18]
    $region85: #{tpu_custom_call.1} parent=1 // pred_fallthru
      _
    // Predicated region
    $region86: #{tpu_custom_call.1} parent=1 // pred_check
      _
    $region87: #{tpu_custom_call.1} parent=1 // pred_check_branch
      %615 = sbr.rel (0) target = $region89
    $region88: #{tpu_custom_call.1} parent=1 // pred_region
      %616 = dma.done [#allocation4], 128
    $region89: #{tpu_custom_call.1} parent=1 // pred_fallthru
      _
    // Predicated region
    $region90: #{tpu_custom_call.1} parent=1 // pred_check
      _
    $region91: #{tpu_custom_call.1} parent=1 // pred_check_branch
      %618 = sbr.rel (0) target = $region93
    $region92: #{tpu_custom_call.1} parent=1 // pred_region
      %619 = dma.done [#allocation15], 128
    $region93: #{tpu_custom_call.1} parent=1 // pred_fallthru
      _
    // Predicated region
    $region94: #{tpu_custom_call.1} parent=1 // pred_check
      _
    $region95: #{tpu_custom_call.1} parent=1 // pred_check_branch
      %621 = sbr.rel (0) target = $region97
    $region96: #{tpu_custom_call.1} parent=1 // pred_region
      %622 = dma.done [#allocation15], 128
    $region97: #{tpu_custom_call.1} parent=1 // pred_fallthru
      _
    // Predicated region
    $region98: #{tpu_custom_call.1} parent=1 // pred_check
      _
    $region99: #{tpu_custom_call.1} parent=1 // pred_check_branch
      %624 = sbr.rel (0) target = $region101
    $region100: #{tpu_custom_call.1} parent=1 // pred_region
      %625 = dma.done [#allocation18], 128
    $region101: #{tpu_custom_call.1} parent=1 // pred_fallthru
      _
    // Predicated region
    $region102: #{tpu_custom_call.1} parent=1 // pred_check
      _
    $region103: #{tpu_custom_call.1} parent=1 // pred_check_branch
      %627 = sbr.rel (0) target = $region105
    $region104: #{tpu_custom_call.1} parent=1 // pred_region
      %628 = dma.done [#allocation18], 128
    $region105: #{tpu_custom_call.1} parent=1 // pred_fallthru
      _
    %629 = vsyncpa [#allocation3], 1
    %630 = vsyncpa [#allocation6], 1
    %631 = vsyncpa [#allocation9], 1
    %632 = vsyncpa [#allocation12], 1
    %633 = vsyncpa [#allocation4], 1
    %634 = vsyncpa [#allocation15], 1
    %635 = vsyncpa [#allocation18], 1

</llo_original>
